<compile_context>
chip_gen: v5e
topology: v5e:2x2
jax: 0.10.0
libtpu: 0.0.40
codegen_flags: <defaults>
</compile_context>

<pallas_src>
import math

import jax
import jax.numpy as jnp
from jax.experimental import pallas as pl
from jax.experimental.pallas import tpu as pltpu


# ---------------- config (small synthetic shapes) ----------------
BATCH = 2
SEQ = 8
HIDDEN = 32
NUM_HEADS = 4
HEAD_DIM = HIDDEN // NUM_HEADS  # 8


def _self_attention_kernel(x_ref, w_ref, b_ref, mask_ref, ctx_ref, probs_ref):
    """One batch element per grid step.

    x_ref:     [1, S, H]        hidden states (bf16)
    w_ref:     [H, 3H]          packed [Wq^T | Wk^T | Wv^T] (bf16)
    b_ref:     [1, 3H]          packed [bq | bk | bv] (f32)
    mask_ref:  [1, 1, S]        additive attention mask (f32)
    ctx_ref:   [1, nH, S, dh]   per-head context (transposed/merged in the wrapper)
    probs_ref: [1, nH, S, S]    attention probabilities
    """
    x = x_ref[0]                                            # [S, H] bf16
    # Hoist the mask broadcast out of the head loop (JAX does not CSE broadcasts).
    mask = jnp.broadcast_to(mask_ref[0], (SEQ, SEQ))        # [S, S] f32

    # Fused QKV projection: ONE MXU push (bf16 operands, f32 accumulate).
    qkv = jnp.dot(x, w_ref[...], preferred_element_type=jnp.float32) + b_ref[...]

    # Fold the attention scale into q once instead of scaling every [S,S] score matrix.
    scale = 1.0 / math.sqrt(HEAD_DIM)
    q = qkv[:, :HIDDEN] * scale                             # [S, H] f32
    k = qkv[:, HIDDEN:2 * HIDDEN]                           # [S, H] f32
    v = qkv[:, 2 * HIDDEN:]                                 # [S, H] f32

    # Contract the head dim of q against the head dim of k -> no explicit transpose (no XLU).
    contract = (((1,), (1,)), ((), ()))

    prob_parts = []
    ctx_parts = []
    for h in range(NUM_HEADS):                              # static, small trip count
        sl = slice(h * HEAD_DIM, (h + 1) * HEAD_DIM)
        qh, kh, vh = q[:, sl], k[:, sl], v[:, sl]           # [S, dh]

        s = jax.lax.dot_general(qh, kh, dimension_numbers=contract,
                                preferred_element_type=jnp.float32)   # [S, S]
        s = s + mask

        # softmax along keys, in f32 (v5e VPU/EUP have no bf16)
        m = jnp.max(s, axis=-1, keepdims=True)
        e = jnp.exp(s - m)
        denom = jnp.sum(e, axis=-1, keepdims=True)
        p = e * pl.reciprocal(denom, approx=True)           # EUP reciprocal (free slot)

        # TODO(synk): nn.Dropout on attention_probs is identity in eval mode; head_mask=None.
        prob_parts.append(p)
        ctx_parts.append(jnp.dot(p, vh, preferred_element_type=jnp.float32))

    # Single coalesced whole-block store per output per grid step (no per-head slivers).
    probs_ref[0] = jnp.stack(prob_parts, axis=0)            # [nH, S, S]
    ctx_ref[0] = jnp.stack(ctx_parts, axis=0)               # [nH, S, dh]


def bert_self_attention(hidden_states, attention_mask, wq, bq, wk, bk, wv, bv):
    """hidden_states: [B, S, H]; attention_mask: [B, 1, 1, S] additive mask.

    wq/wk/wv are PyTorch-style Linear weights of shape [out, in]; we pack W.T for
    all three projections into one [H, 3H] bf16 operand so the kernel computes
    x @ [Wq^T | Wk^T | Wv^T] + [bq | bk | bv] exactly like three nn.Linear layers.
    """
    B, S, H = hidden_states.shape
    nH, dh = NUM_HEADS, HEAD_DIM

    w_qkv = jnp.concatenate([wq.T, wk.T, wv.T], axis=1).astype(jnp.bfloat16)      # [H, 3H]
    b_qkv = jnp.concatenate([bq, bk, bv]).reshape(1, 3 * H).astype(jnp.float32)   # [1, 3H]
    mask = attention_mask.reshape(B, 1, S).astype(jnp.float32)                    # [B, 1, S]
    x = hidden_states.astype(jnp.bfloat16)

    out_shapes = (
        jax.ShapeDtypeStruct((B, nH, S, dh), jnp.float32),   # per-head context
        jax.ShapeDtypeStruct((B, nH, S, S), jnp.float32),    # attention probs
    )

    ctx_heads, probs = pl.pallas_call(
        _self_attention_kernel,
        out_shape=out_shapes,
        grid=(B,),
        in_specs=[
            pl.BlockSpec((1, S, H), lambda b: (b, 0, 0)),        # hidden_states
            pl.BlockSpec((H, 3 * H), lambda b: (0, 0)),          # packed W_qkv
            pl.BlockSpec((1, 3 * H), lambda b: (0, 0)),          # packed b_qkv
            pl.BlockSpec((1, 1, S), lambda b: (b, 0, 0)),        # mask
        ],
        out_specs=(
            pl.BlockSpec((1, nH, S, dh), lambda b: (b, 0, 0, 0)),
            pl.BlockSpec((1, nH, S, S), lambda b: (b, 0, 0, 0)),
        ),
        compiler_params=pltpu.CompilerParams(
            dimension_semantics=("parallel",)),
    )(x, w_qkv, b_qkv, mask)

    # Layout plumbing outside the kernel (same permute+view the PyTorch module does).
    ctx = ctx_heads.transpose(0, 2, 1, 3).reshape(B, S, H)
    return ctx, probs


def _reference(hidden_states, attention_mask, wq, bq, wk, bk, wv, bv):
    """Plain-JAX reference mirroring the PyTorch forward (eval mode)."""
    B, S, H = hidden_states.shape

    def proj(w, b):
        y = hidden_states @ w.T + b                          # [B, S, H]
        return y.reshape(B, S, NUM_HEADS, HEAD_DIM).transpose(0, 2, 1, 3)

    q, k, v = proj(wq, bq), proj(wk, bk), proj(wv, bv)       # [B, nH, S, dh]
    scores = jnp.einsum("bhqd,bhkd->bhqk", q, k) / math.sqrt(HEAD_DIM)
    scores = scores + attention_mask                         # [B,1,1,S] broadcast
    probs = jax.nn.softmax(scores, axis=-1)
    ctx = jnp.einsum("bhqk,bhkd->bhqd", probs, v)
    ctx = ctx.transpose(0, 2, 1, 3).reshape(B, S, H)
    return ctx, probs


if __name__ == "__main__":
    key = jax.random.PRNGKey(0)
    ks = jax.random.split(key, 8)

    hidden_states = jax.random.normal(ks[0], (BATCH, SEQ, HIDDEN), dtype=jnp.float32)

    # Deterministic parameter init (nn.Linear: weight [out, in], bias [out]).
    init = lambda k, shape: jax.random.normal(k, shape, dtype=jnp.float32) * 0.02
    wq, bq = init(ks[1], (HIDDEN, HIDDEN)), init(ks[2], (HIDDEN,))
    wk, bk = init(ks[3], (HIDDEN, HIDDEN)), init(ks[4], (HIDDEN,))
    wv, bv = init(ks[5], (HIDDEN, HIDDEN)), init(ks[6], (HIDDEN,))

    # BERT-style additive mask: last two tokens of batch 1 are masked out.
    pad = jnp.ones((BATCH, SEQ), dtype=jnp.float32).at[1, -2:].set(0.0)
    attention_mask = (1.0 - pad)[:, None, None, :] * -10000.0   # [B, 1, 1, S]

    ctx, probs = bert_self_attention(hidden_states, attention_mask,
                                     wq, bq, wk, bk, wv, bv)
    jax.block_until_ready((ctx, probs))

    # Reference uses the same bf16 input quantization for x / W (f32 everywhere else),
    # matching the kernel's mixed precision; accumulation stays f32 in both.
    rt = lambda a: a.astype(jnp.bfloat16).astype(jnp.float32)
    ref_ctx, ref_probs = _reference(rt(hidden_states), attention_mask,
                                    rt(wq), bq, rt(wk), bk, rt(wv), bv)

    assert jnp.allclose(ctx, ref_ctx, atol=2e-3, rtol=2e-3)
    assert jnp.allclose(probs, ref_probs, atol=2e-3, rtol=2e-3)

    print("KERNEL_OK")
</pallas_src>

<mosaic_0001>
module attributes {stable_mosaic.version = 11 : i64} {
  func.func @_self_attention_kernel(%arg0: i32, %arg1: memref<1x8x32xbf16, #tpu.memory_space<vmem>>, %arg2: memref<32x96xbf16, #tpu.memory_space<vmem>>, %arg3: memref<1x96xf32, #tpu.memory_space<vmem>>, %arg4: memref<1x1x8xf32, #tpu.memory_space<vmem>>, %arg5: memref<1x4x8x8xf32, #tpu.memory_space<vmem>>, %arg6: memref<1x4x8x8xf32, #tpu.memory_space<vmem>>) attributes {dimension_semantics = [#tpu.dimension_semantics<parallel>], iteration_bounds = array<i64: 2>, scalar_prefetch = 0 : i64, scratch_operands = 0 : i64, tpu.core_type = #tpu.core_type<tc>, window_params = [{transform_indices = @transform_0, window_bounds = array<i64: 1, 8, 32>}, {pipeline_mode = #tpu.pipeline_mode<synchronous>, transform_indices = @transform_1, window_bounds = array<i64: 32, 96>}, {pipeline_mode = #tpu.pipeline_mode<synchronous>, transform_indices = @transform_2, window_bounds = array<i64: 1, 96>}, {transform_indices = @transform_3, window_bounds = array<i64: 1, 1, 8>}, {transform_indices = @transform_4, window_bounds = array<i64: 1, 4, 8, 8>}, {transform_indices = @transform_5, window_bounds = array<i64: 1, 4, 8, 8>}]} {
    %c0 = arith.constant 0 : index
    %c0_0 = arith.constant 0 : index
    %c0_1 = arith.constant 0 : index
    %0 = vector.load %arg1[%c0, %c0_0, %c0_1] : memref<1x8x32xbf16, #tpu.memory_space<vmem>>, vector<1x8x32xbf16>
    %1 = vector.shape_cast %0 : vector<1x8x32xbf16> to vector<8x32xbf16>
    %c0_2 = arith.constant 0 : index
    %c0_3 = arith.constant 0 : index
    %c0_4 = arith.constant 0 : index
    %2 = vector.load %arg4[%c0_2, %c0_3, %c0_4] : memref<1x1x8xf32, #tpu.memory_space<vmem>>, vector<1x1x8xf32>
    %3 = vector.shape_cast %2 : vector<1x1x8xf32> to vector<1x8xf32>
    %4 = vector.shape_cast %3 : vector<1x8xf32> to vector<1x8xf32>
    %5 = vector.broadcast %4 : vector<1x8xf32> to vector<8x8xf32>
    %c0_5 = arith.constant 0 : index
    %c0_6 = arith.constant 0 : index
    %6 = vector.load %arg2[%c0_5, %c0_6] : memref<32x96xbf16, #tpu.memory_space<vmem>>, vector<32x96xbf16>
    %cst = arith.constant dense<0.000000e+00> : vector<8x96xf32>
    %7 = tpu.matmul %1, %6, %cst {dimension_numbers = #tpu.dot_dimension_numbers<[1], [0], [0], [1], [0, 0, 1, 1], [], []>} : vector<8x32xbf16>, vector<32x96xbf16>, vector<8x96xf32> -> vector<8x96xf32>
    %c0_7 = arith.constant 0 : index
    %c0_8 = arith.constant 0 : index
    %8 = vector.load %arg3[%c0_7, %c0_8] : memref<1x96xf32, #tpu.memory_space<vmem>>, vector<1x96xf32>
    %9 = vector.broadcast %8 : vector<1x96xf32> to vector<8x96xf32>
    %10 = arith.addf %7, %9 : vector<8x96xf32>
    %11 = vector.extract_strided_slice %10 {offsets = [0, 0], sizes = [8, 32], strides = [1, 1]} : vector<8x96xf32> to vector<8x32xf32>
    %cst_9 = arith.constant 0.353553385 : f32
    %12 = vector.broadcast %cst_9 : f32 to vector<8x32xf32>
    %13 = arith.mulf %11, %12 : vector<8x32xf32>
    %14 = vector.extract_strided_slice %10 {offsets = [0, 32], sizes = [8, 32], strides = [1, 1]} : vector<8x96xf32> to vector<8x32xf32>
    %15 = vector.extract_strided_slice %10 {offsets = [0, 64], sizes = [8, 32], strides = [1, 1]} : vector<8x96xf32> to vector<8x32xf32>
    %16 = vector.extract_strided_slice %13 {offsets = [0, 0], sizes = [8, 8], strides = [1, 1]} : vector<8x32xf32> to vector<8x8xf32>
    %17 = vector.extract_strided_slice %14 {offsets = [0, 0], sizes = [8, 8], strides = [1, 1]} : vector<8x32xf32> to vector<8x8xf32>
    %18 = vector.extract_strided_slice %15 {offsets = [0, 0], sizes = [8, 8], strides = [1, 1]} : vector<8x32xf32> to vector<8x8xf32>
    %cst_10 = arith.constant dense<0.000000e+00> : vector<8x8xf32>
    %19 = tpu.matmul %16, %17, %cst_10 {dimension_numbers = #tpu.dot_dimension_numbers<[1], [1], [0], [0], [0, 0, 1, 0], [], []>} : vector<8x8xf32>, vector<8x8xf32>, vector<8x8xf32> -> vector<8x8xf32>
    %20 = arith.addf %19, %5 : vector<8x8xf32>
    %cst_11 = arith.constant dense<0xFF800000> : vector<8xf32>
    %21 = vector.multi_reduction <maximumf>, %20, %cst_11 [1] : vector<8x8xf32> to vector<8xf32>
    %22 = vector.shape_cast %21 : vector<8xf32> to vector<8x1xf32>
    %23 = vector.broadcast %22 : vector<8x1xf32> to vector<8x8xf32>
    %24 = arith.subf %20, %23 : vector<8x8xf32>
    %25 = math.exp %24 : vector<8x8xf32>
    %cst_12 = arith.constant dense<0.000000e+00> : vector<8xf32>
    %26 = vector.multi_reduction <add>, %25, %cst_12 [1] : vector<8x8xf32> to vector<8xf32>
    %27 = vector.shape_cast %26 : vector<8xf32> to vector<8x1xf32>
    %28 = tpu.reciprocal %27 {approx = true} : vector<8x1xf32> -> vector<8x1xf32>
    %29 = vector.broadcast %28 : vector<8x1xf32> to vector<8x8xf32>
    %30 = arith.mulf %25, %29 : vector<8x8xf32>
    %cst_13 = arith.constant dense<0.000000e+00> : vector<8x8xf32>
    %31 = tpu.matmul %30, %18, %cst_13 {dimension_numbers = #tpu.dot_dimension_numbers<[1], [0], [0], [1], [0, 0, 1, 1], [], []>} : vector<8x8xf32>, vector<8x8xf32>, vector<8x8xf32> -> vector<8x8xf32>
    %32 = vector.extract_strided_slice %13 {offsets = [0, 8], sizes = [8, 8], strides = [1, 1]} : vector<8x32xf32> to vector<8x8xf32>
    %33 = vector.extract_strided_slice %14 {offsets = [0, 8], sizes = [8, 8], strides = [1, 1]} : vector<8x32xf32> to vector<8x8xf32>
    %34 = vector.extract_strided_slice %15 {offsets = [0, 8], sizes = [8, 8], strides = [1, 1]} : vector<8x32xf32> to vector<8x8xf32>
    %cst_14 = arith.constant dense<0.000000e+00> : vector<8x8xf32>
    %35 = tpu.matmul %32, %33, %cst_14 {dimension_numbers = #tpu.dot_dimension_numbers<[1], [1], [0], [0], [0, 0, 1, 0], [], []>} : vector<8x8xf32>, vector<8x8xf32>, vector<8x8xf32> -> vector<8x8xf32>
    %36 = arith.addf %35, %5 : vector<8x8xf32>
    %cst_15 = arith.constant dense<0xFF800000> : vector<8xf32>
    %37 = vector.multi_reduction <maximumf>, %36, %cst_15 [1] : vector<8x8xf32> to vector<8xf32>
    %38 = vector.shape_cast %37 : vector<8xf32> to vector<8x1xf32>
    %39 = vector.broadcast %38 : vector<8x1xf32> to vector<8x8xf32>
    %40 = arith.subf %36, %39 : vector<8x8xf32>
    %41 = math.exp %40 : vector<8x8xf32>
    %cst_16 = arith.constant dense<0.000000e+00> : vector<8xf32>
    %42 = vector.multi_reduction <add>, %41, %cst_16 [1] : vector<8x8xf32> to vector<8xf32>
    %43 = vector.shape_cast %42 : vector<8xf32> to vector<8x1xf32>
    %44 = tpu.reciprocal %43 {approx = true} : vector<8x1xf32> -> vector<8x1xf32>
    %45 = vector.broadcast %44 : vector<8x1xf32> to vector<8x8xf32>
    %46 = arith.mulf %41, %45 : vector<8x8xf32>
    %cst_17 = arith.constant dense<0.000000e+00> : vector<8x8xf32>
    %47 = tpu.matmul %46, %34, %cst_17 {dimension_numbers = #tpu.dot_dimension_numbers<[1], [0], [0], [1], [0, 0, 1, 1], [], []>} : vector<8x8xf32>, vector<8x8xf32>, vector<8x8xf32> -> vector<8x8xf32>
    %48 = vector.extract_strided_slice %13 {offsets = [0, 16], sizes = [8, 8], strides = [1, 1]} : vector<8x32xf32> to vector<8x8xf32>
    %49 = vector.extract_strided_slice %14 {offsets = [0, 16], sizes = [8, 8], strides = [1, 1]} : vector<8x32xf32> to vector<8x8xf32>
    %50 = vector.extract_strided_slice %15 {offsets = [0, 16], sizes = [8, 8], strides = [1, 1]} : vector<8x32xf32> to vector<8x8xf32>
    %cst_18 = arith.constant dense<0.000000e+00> : vector<8x8xf32>
    %51 = tpu.matmul %48, %49, %cst_18 {dimension_numbers = #tpu.dot_dimension_numbers<[1], [1], [0], [0], [0, 0, 1, 0], [], []>} : vector<8x8xf32>, vector<8x8xf32>, vector<8x8xf32> -> vector<8x8xf32>
    %52 = arith.addf %51, %5 : vector<8x8xf32>
    %cst_19 = arith.constant dense<0xFF800000> : vector<8xf32>
    %53 = vector.multi_reduction <maximumf>, %52, %cst_19 [1] : vector<8x8xf32> to vector<8xf32>
    %54 = vector.shape_cast %53 : vector<8xf32> to vector<8x1xf32>
    %55 = vector.broadcast %54 : vector<8x1xf32> to vector<8x8xf32>
    %56 = arith.subf %52, %55 : vector<8x8xf32>
    %57 = math.exp %56 : vector<8x8xf32>
    %cst_20 = arith.constant dense<0.000000e+00> : vector<8xf32>
    %58 = vector.multi_reduction <add>, %57, %cst_20 [1] : vector<8x8xf32> to vector<8xf32>
    %59 = vector.shape_cast %58 : vector<8xf32> to vector<8x1xf32>
    %60 = tpu.reciprocal %59 {approx = true} : vector<8x1xf32> -> vector<8x1xf32>
    %61 = vector.broadcast %60 : vector<8x1xf32> to vector<8x8xf32>
    %62 = arith.mulf %57, %61 : vector<8x8xf32>
    %cst_21 = arith.constant dense<0.000000e+00> : vector<8x8xf32>
    %63 = tpu.matmul %62, %50, %cst_21 {dimension_numbers = #tpu.dot_dimension_numbers<[1], [0], [0], [1], [0, 0, 1, 1], [], []>} : vector<8x8xf32>, vector<8x8xf32>, vector<8x8xf32> -> vector<8x8xf32>
    %64 = vector.extract_strided_slice %13 {offsets = [0, 24], sizes = [8, 8], strides = [1, 1]} : vector<8x32xf32> to vector<8x8xf32>
    %65 = vector.extract_strided_slice %14 {offsets = [0, 24], sizes = [8, 8], strides = [1, 1]} : vector<8x32xf32> to vector<8x8xf32>
    %66 = vector.extract_strided_slice %15 {offsets = [0, 24], sizes = [8, 8], strides = [1, 1]} : vector<8x32xf32> to vector<8x8xf32>
    %cst_22 = arith.constant dense<0.000000e+00> : vector<8x8xf32>
    %67 = tpu.matmul %64, %65, %cst_22 {dimension_numbers = #tpu.dot_dimension_numbers<[1], [1], [0], [0], [0, 0, 1, 0], [], []>} : vector<8x8xf32>, vector<8x8xf32>, vector<8x8xf32> -> vector<8x8xf32>
    %68 = arith.addf %67, %5 : vector<8x8xf32>
    %cst_23 = arith.constant dense<0xFF800000> : vector<8xf32>
    %69 = vector.multi_reduction <maximumf>, %68, %cst_23 [1] : vector<8x8xf32> to vector<8xf32>
    %70 = vector.shape_cast %69 : vector<8xf32> to vector<8x1xf32>
    %71 = vector.broadcast %70 : vector<8x1xf32> to vector<8x8xf32>
    %72 = arith.subf %68, %71 : vector<8x8xf32>
    %73 = math.exp %72 : vector<8x8xf32>
    %cst_24 = arith.constant dense<0.000000e+00> : vector<8xf32>
    %74 = vector.multi_reduction <add>, %73, %cst_24 [1] : vector<8x8xf32> to vector<8xf32>
    %75 = vector.shape_cast %74 : vector<8xf32> to vector<8x1xf32>
    %76 = tpu.reciprocal %75 {approx = true} : vector<8x1xf32> -> vector<8x1xf32>
    %77 = vector.broadcast %76 : vector<8x1xf32> to vector<8x8xf32>
    %78 = arith.mulf %73, %77 : vector<8x8xf32>
    %cst_25 = arith.constant dense<0.000000e+00> : vector<8x8xf32>
    %79 = tpu.matmul %78, %66, %cst_25 {dimension_numbers = #tpu.dot_dimension_numbers<[1], [0], [0], [1], [0, 0, 1, 1], [], []>} : vector<8x8xf32>, vector<8x8xf32>, vector<8x8xf32> -> vector<8x8xf32>
    %80 = vector.shape_cast %30 : vector<8x8xf32> to vector<1x8x8xf32>
    %81 = vector.shape_cast %46 : vector<8x8xf32> to vector<1x8x8xf32>
    %82 = vector.shape_cast %62 : vector<8x8xf32> to vector<1x8x8xf32>
    %83 = vector.shape_cast %78 : vector<8x8xf32> to vector<1x8x8xf32>
    %84 = tpu.concatenate %80, %81, %82, %83 in 0 : vector<1x8x8xf32>, vector<1x8x8xf32>, vector<1x8x8xf32>, vector<1x8x8xf32> -> vector<4x8x8xf32>
    %c0_26 = arith.constant 0 : index
    %c0_27 = arith.constant 0 : index
    %c0_28 = arith.constant 0 : index
    %c0_29 = arith.constant 0 : index
    %85 = vector.load %arg6[%c0_26, %c0_27, %c0_28, %c0_29] : memref<1x4x8x8xf32, #tpu.memory_space<vmem>>, vector<1x4x8x8xf32>
    %86 = vector.shape_cast %85 : vector<1x4x8x8xf32> to vector<4x8x8xf32>
    %87 = vector.shape_cast %84 : vector<4x8x8xf32> to vector<1x4x8x8xf32>
    tpu.vector_store %arg6[%c0_26, %c0_27, %c0_28, %c0_29], %87 {strides = array<i32>} : memref<1x4x8x8xf32, #tpu.memory_space<vmem>>, vector<1x4x8x8xf32>,
    %88 = vector.shape_cast %31 : vector<8x8xf32> to vector<1x8x8xf32>
    %89 = vector.shape_cast %47 : vector<8x8xf32> to vector<1x8x8xf32>
    %90 = vector.shape_cast %63 : vector<8x8xf32> to vector<1x8x8xf32>
    %91 = vector.shape_cast %79 : vector<8x8xf32> to vector<1x8x8xf32>
    %92 = tpu.concatenate %88, %89, %90, %91 in 0 : vector<1x8x8xf32>, vector<1x8x8xf32>, vector<1x8x8xf32>, vector<1x8x8xf32> -> vector<4x8x8xf32>
    %c0_30 = arith.constant 0 : index
    %c0_31 = arith.constant 0 : index
    %c0_32 = arith.constant 0 : index
    %c0_33 = arith.constant 0 : index
    %93 = vector.load %arg5[%c0_30, %c0_31, %c0_32, %c0_33] : memref<1x4x8x8xf32, #tpu.memory_space<vmem>>, vector<1x4x8x8xf32>
    %94 = vector.shape_cast %93 : vector<1x4x8x8xf32> to vector<4x8x8xf32>
    %95 = vector.shape_cast %92 : vector<4x8x8xf32> to vector<1x4x8x8xf32>
    tpu.vector_store %arg5[%c0_30, %c0_31, %c0_32, %c0_33], %95 {strides = array<i32>} : memref<1x4x8x8xf32, #tpu.memory_space<vmem>>, vector<1x4x8x8xf32>,
    return
  }
  func.func @transform_0(%arg0: i32) -> (i32, i32, i32) {
    %c0_i32 = arith.constant 0 : i32
    %c0_i32_0 = arith.constant 0 : i32
    %c0_i32_1 = arith.constant 0 : i32
    return %arg0, %c0_i32, %c0_i32_0 : i32, i32, i32
  }
  func.func @transform_1(%arg0: i32) -> (i32, i32) {
    %c0_i32 = arith.constant 0 : i32
    %c0_i32_0 = arith.constant 0 : i32
    %c0_i32_1 = arith.constant 0 : i32
    return %c0_i32, %c0_i32_0 : i32, i32
  }
  func.func @transform_2(%arg0: i32) -> (i32, i32) {
    %c0_i32 = arith.constant 0 : i32
    %c0_i32_0 = arith.constant 0 : i32
    %c0_i32_1 = arith.constant 0 : i32
    return %c0_i32, %c0_i32_0 : i32, i32
  }
  func.func @transform_3(%arg0: i32) -> (i32, i32, i32) {
    %c0_i32 = arith.constant 0 : i32
    %c0_i32_0 = arith.constant 0 : i32
    %c0_i32_1 = arith.constant 0 : i32
    return %arg0, %c0_i32, %c0_i32_0 : i32, i32, i32
  }
  func.func @transform_4(%arg0: i32) -> (i32, i32, i32, i32) {
    %c0_i32 = arith.constant 0 : i32
    %c0_i32_0 = arith.constant 0 : i32
    %c0_i32_1 = arith.constant 0 : i32
    %c0_i32_2 = arith.constant 0 : i32
    return %arg0, %c0_i32, %c0_i32_0, %c0_i32_1 : i32, i32, i32, i32
  }
  func.func @transform_5(%arg0: i32) -> (i32, i32, i32, i32) {
    %c0_i32 = arith.constant 0 : i32
    %c0_i32_0 = arith.constant 0 : i32
    %c0_i32_1 = arith.constant 0 : i32
    %c0_i32_2 = arith.constant 0 : i32
    return %arg0, %c0_i32, %c0_i32_0, %c0_i32_1 : i32, i32, i32, i32
  }
}

</mosaic_0001>

<llo_original>
// kernel: tpu_custom_call.1
$region0: #{tpu_custom_call.1}
  #allocation0 [shape = 'u32[]', space=smem, size = 0x4, offset = 0x4, fixed_abs, tag = 'smem constant byte address 0x4 - core index']
  #allocation1 [shape = 'u32[72,128]{1,0:T(1,128)}', space=vmem, size = 0x9000, scoped, tag = 'internal scratch']
  %s0 = inlined_call_operand.hbm [shape: bf16[2,8,32], index: 0, kind: input, shape index: {}]
  %s1 = inlined_call_operand.hbm [shape: bf16[32,96], index: 1, kind: input, shape index: {}]
  %s2 = inlined_call_operand.hbm [shape: f32[1,96], index: 2, kind: input, shape index: {}]
  %s3 = inlined_call_operand.vmem [shape: f32[2,1,8], index: 3, kind: input, shape index: {}]
  %s4 = inlined_call_operand.hbm [shape: f32[2,4,8,8], index: 4, kind: output, shape index: {0}]
  %s5 = inlined_call_operand.hbm [shape: f32[2,4,8,8], index: 5, kind: output, shape index: {1}]
  %6 = xla_tuple %s4, %s5
  %s7 = sld [smem:[#allocation0]]
  $region69: #{tpu_custom_call.1} parent=0
    _
  %s9 = ssub.s32 1, %s7
  %s10 = scalar_select 0, %s9, %s7
  $region1: #{tpu_custom_call.1} parent=0
    #allocation2 [shape = 'u8[4096]{0}', space=vmem, size = 0x1000, scoped, tag = 'input window, operand 0']
    #allocation3 [shape = 's32[2]{0}', space=sflag, size = 0x8, scoped, tag = 'scoped memory for tpu_custom_call.1']
    #allocation4 [shape = 's32[2]{0}', space=sflag, size = 0x8, scoped, tag = 'scoped memory for tpu_custom_call.1']
    #allocation5 [shape = 'u8[8192]{0}', space=vmem, size = 0x2000, scoped, tag = 'input window, operand 1, single buffered']
    #allocation6 [shape = 's32[1]{0}', space=sflag, size = 0x4, scoped, tag = 'scoped memory for tpu_custom_call.1']
    #allocation7 [shape = 'u8[512]{0}', space=vmem, size = 0x400, scoped, tag = 'input window, operand 2, single buffered']
    #allocation8 [shape = 'u8[32768]{0}', space=vmem, size = 0x8000, scoped, tag = 'output window, operand 0']
    #allocation9 [shape = 'u8[32768]{0}', space=vmem, size = 0x8000, scoped, tag = 'output window, operand 1']
    #allocation10 [shape = 's32[2]{0}', space=sflag, size = 0x8, scoped, tag = 'scoped memory for tpu_custom_call.1']
    %11 = vsyncpa [#allocation3], 0
    %s12 = scalar_lea.sflag [#allocation3], 1
    %13 = vsyncpa %s12, 0
    %14 = vsyncpa [#allocation6], 0
    %15 = vsyncpa [#allocation4], 0
    %s16 = scalar_lea.sflag [#allocation4], 1
    %17 = vsyncpa %s16, 0
    %18 = vsyncpa [#allocation10], 0
    %s19 = scalar_lea.sflag [#allocation10], 1
    %20 = vsyncpa %s19, 0
    loop: start=0, step=1, limit=4
    $region2: #{tpu_custom_call.1} parent=1 // loop_pre_header
      _
    $region3: #{tpu_custom_call.1} parent=1 // loop_header
      %s22 = sphi 0, %s26
      %p23 = scmp.ge.s32.totalorder %s22, 4
      %s32 = sphi 0, %s34
      %s35 = sphi 0, %s32
      %s36 = sphi 0, %s35
      %s52 = sphi 0, %s36
      %s56 = sphi 0, %s56
      %s58 = sphi 0, %s56
      %s59 = sphi 0, %s58
      %s73 = sphi 0, %s59
      %s77 = sphi 0, %s77
      %s79 = sphi 0, %s77
      %s80 = sphi 0, %s79
      %s94 = sphi 0, %s80
      %s100 = sphi 0, %s102
      %s103 = sphi 0, %s100
      %s104 = sphi 0, %s103
      %s120 = sphi 0, %s104
      %s126 = sphi 0, %s128
      %s129 = sphi 0, %s126
      %s130 = sphi 0, %s129
      %s146 = sphi 0, %s130
      %s152 = sphi 0, %s154
      %s155 = sphi 0, %s152
      %s156 = sphi 0, %s155
      %s172 = sphi 0, %s156
    $region4: #{tpu_custom_call.1} parent=1 // loop_header_branch
      %25 = sbr.rel (%p23) target = $region8
    $region5: #{tpu_custom_call.1} parent=1 // loop_body
      %s27 = ssub.s32 %s22, 1
      %s28 = ssub.s32 %s22, 2
      %s29 = sadd.s32 %s22, 1
      %s30 = ssub.s32 %s22, %s29
      %p31 = scmp.eq.s32.totalorder %s30, 0
      %s33 = sadd.s32 %s32, 1
      %s34 = scalar_select %p31, %s32, %s33
      %p37 = pneg %p31
      %p38 = scmp.eq.s32.totalorder %s22, 1
      %p39 = por %p37, %p38
      %p40 = scmp.ne.s32.totalorder %s32, %s35
      %p41 = scmp.eq.s32.totalorder %s22, 0
      %p42 = por %p40, %p41
      %p43 = scmp.ne.s32.totalorder %s32, %s35
      %p44 = scmp.eq.s32.totalorder %s27, 1
      %p45 = por %p43, %p44
      %p46 = scmp.ne.s32.totalorder %s35, %s36
      %p47 = scmp.eq.s32.totalorder %s27, 0
      %p48 = por %p46, %p47
      %p49 = scmp.ne.s32.totalorder %s35, %s36
      %p50 = scmp.eq.s32.totalorder %s28, 1
      %p51 = por %p49, %p50
      %p53 = scmp.ne.s32.totalorder %s36, %s52
      %p54 = scmp.eq.s32.totalorder %s28, 0
      %p55 = por %p53, %p54
      %s57 = sadd.s32 %s56, 1
      %p60 = scmp.eq.s32.totalorder %s22, 1
      %p61 = scmp.ne.s32.totalorder %s56, %s58
      %p62 = scmp.eq.s32.totalorder %s22, 0
      %p63 = por %p61, %p62
      %p64 = scmp.ne.s32.totalorder %s56, %s58
      %p65 = scmp.eq.s32.totalorder %s27, 1
      %p66 = por %p64, %p65
      %p67 = scmp.ne.s32.totalorder %s58, %s59
      %p68 = scmp.eq.s32.totalorder %s27, 0
      %p69 = por %p67, %p68
      %p70 = scmp.ne.s32.totalorder %s58, %s59
      %p71 = scmp.eq.s32.totalorder %s28, 1
      %p72 = por %p70, %p71
      %p74 = scmp.ne.s32.totalorder %s59, %s73
      %p75 = scmp.eq.s32.totalorder %s28, 0
      %p76 = por %p74, %p75
      %s78 = sadd.s32 %s77, 1
      %p81 = scmp.eq.s32.totalorder %s22, 1
      %p82 = scmp.ne.s32.totalorder %s77, %s79
      %p83 = scmp.eq.s32.totalorder %s22, 0
      %p84 = por %p82, %p83
      %p85 = scmp.ne.s32.totalorder %s77, %s79
      %p86 = scmp.eq.s32.totalorder %s27, 1
      %p87 = por %p85, %p86
      %p88 = scmp.ne.s32.totalorder %s79, %s80
      %p89 = scmp.eq.s32.totalorder %s27, 0
      %p90 = por %p88, %p89
      %p91 = scmp.ne.s32.totalorder %s79, %s80
      %p92 = scmp.eq.s32.totalorder %s28, 1
      %p93 = por %p91, %p92
      %p95 = scmp.ne.s32.totalorder %s80, %s94
      %p96 = scmp.eq.s32.totalorder %s28, 0
      %p97 = por %p95, %p96
      %s98 = ssub.s32 %s22, %s29
      %p99 = scmp.eq.s32.totalorder %s98, 0
      %s101 = sadd.s32 %s100, 1
      %s102 = scalar_select %p99, %s100, %s101
      %p105 = pneg %p99
      %p106 = scmp.eq.s32.totalorder %s22, 1
      %p107 = por %p105, %p106
      %p108 = scmp.ne.s32.totalorder %s100, %s103
      %p109 = scmp.eq.s32.totalorder %s22, 0
      %p110 = por %p108, %p109
      %p111 = scmp.ne.s32.totalorder %s100, %s103
      %p112 = scmp.eq.s32.totalorder %s27, 1
      %p113 = por %p111, %p112
      %p114 = scmp.ne.s32.totalorder %s103, %s104
      %p115 = scmp.eq.s32.totalorder %s27, 0
      %p116 = por %p114, %p115
      %p117 = scmp.ne.s32.totalorder %s103, %s104
      %p118 = scmp.eq.s32.totalorder %s28, 1
      %p119 = por %p117, %p118
      %p121 = scmp.ne.s32.totalorder %s104, %s120
      %p122 = scmp.eq.s32.totalorder %s28, 0
      %p123 = por %p121, %p122
      %s124 = ssub.s32 %s22, %s29
      %p125 = scmp.eq.s32.totalorder %s124, 0
      %s127 = sadd.s32 %s126, 1
      %s128 = scalar_select %p125, %s126, %s127
      %p131 = pneg %p125
      %p132 = scmp.eq.s32.totalorder %s22, 1
      %p133 = por %p131, %p132
      %p134 = scmp.ne.s32.totalorder %s126, %s129
      %p135 = scmp.eq.s32.totalorder %s22, 0
      %p136 = por %p134, %p135
      %p137 = scmp.ne.s32.totalorder %s126, %s129
      %p138 = scmp.eq.s32.totalorder %s27, 1
      %p139 = por %p137, %p138
      %p140 = scmp.ne.s32.totalorder %s129, %s130
      %p141 = scmp.eq.s32.totalorder %s27, 0
      %p142 = por %p140, %p141
      %p143 = scmp.ne.s32.totalorder %s129, %s130
      %p144 = scmp.eq.s32.totalorder %s28, 1
      %p145 = por %p143, %p144
      %p147 = scmp.ne.s32.totalorder %s130, %s146
      %p148 = scmp.eq.s32.totalorder %s28, 0
      %p149 = por %p147, %p148
      %s150 = ssub.s32 %s22, %s29
      %p151 = scmp.eq.s32.totalorder %s150, 0
      %s153 = sadd.s32 %s152, 1
      %s154 = scalar_select %p151, %s152, %s153
      %p157 = pneg %p151
      %p158 = scmp.eq.s32.totalorder %s22, 1
      %p159 = por %p157, %p158
      %p160 = scmp.ne.s32.totalorder %s152, %s155
      %p161 = scmp.eq.s32.totalorder %s22, 0
      %p162 = por %p160, %p161
      %p163 = scmp.ne.s32.totalorder %s152, %s155
      %p164 = scmp.eq.s32.totalorder %s27, 1
      %p165 = por %p163, %p164
      %p166 = scmp.ne.s32.totalorder %s155, %s156
      %p167 = scmp.eq.s32.totalorder %s27, 0
      %p168 = por %p166, %p167
      %p169 = scmp.ne.s32.totalorder %s155, %s156
      %p170 = scmp.eq.s32.totalorder %s28, 1
      %p171 = por %p169, %p170
      %p173 = scmp.ne.s32.totalorder %s156, %s172
      %p174 = scmp.eq.s32.totalorder %s28, 0
      %p175 = por %p173, %p174
      %p176 = scmp.le.s32.totalorder 1, %s22
      %p177 = scmp.lt.s32.totalorder %s22, 3
      %p178 = pnand %p176, %p177
      %p179 = pneg %p178
      // Predicated region
      $region9: #{tpu_custom_call.1} parent=5 // pred_check
        _
      $region10: #{tpu_custom_call.1} parent=5 // pred_check_branch
        %181 = sbr.rel (%p178) target = $region12
      $region11: #{tpu_custom_call.1} parent=5 // pred_region
        %s182 = ssub.s32 %s22, 1
        // Predicated region
        $region13: #{tpu_custom_call.1} parent=11 // pred_check
          %p183 = pneg %p69
        $region14: #{tpu_custom_call.1} parent=11 // pred_check_branch
          %185 = sbr.rel (%p183) target = $region16
        $region15: #{tpu_custom_call.1} parent=11 // pred_region
          %187 = vsyncadd [#allocation6], 0
          %s188 = sshll.u32 %s1, 4
          %s189 = int_to_ptr.hbm [resolvable:$true] %s188
          %s190 = sshll.u32 [#allocation5], 4
          %s191 = int_to_ptr.vmem [resolvable:$true] %s190
          %196 = dma.hbm_to_vmem [thread:$0]  %s189, 256, %s191, [#allocation6], 64, 64, 4
        $region16: #{tpu_custom_call.1} parent=11 // pred_fallthru
          _
        // Predicated region
        $region17: #{tpu_custom_call.1} parent=11 // pred_check
          %p197 = pneg %p90
        $region18: #{tpu_custom_call.1} parent=11 // pred_check_branch
          %199 = sbr.rel (%p197) target = $region20
        $region19: #{tpu_custom_call.1} parent=11 // pred_region
          %201 = vsyncadd [#allocation6], 0
          %s203 = sshll.u32 %s2, 4
          %s204 = int_to_ptr.hbm [resolvable:$true] %s203
          %s205 = sshll.u32 [#allocation7], 4
          %s206 = int_to_ptr.vmem [resolvable:$true] %s205
          %208 = dma.hbm_to_vmem [thread:$0]  %s204, 16, %s206, [#allocation6]
        $region20: #{tpu_custom_call.1} parent=11 // pred_fallthru
          _
      $region12: #{tpu_custom_call.1} parent=5 // pred_fallthru
        _
      %p209 = scmp.lt.s32.totalorder %s22, 2
      // Predicated region
      $region21: #{tpu_custom_call.1} parent=5 // pred_check
        %p210 = pneg %p209
      $region22: #{tpu_custom_call.1} parent=5 // pred_check_branch
        %212 = sbr.rel (%p210) target = $region24
      $region23: #{tpu_custom_call.1} parent=5 // pred_region
        // Predicated region
        $region25: #{tpu_custom_call.1} parent=23 // pred_check
          %p213 = pneg %p42
        $region26: #{tpu_custom_call.1} parent=23 // pred_check_branch
          %215 = sbr.rel (%p213) target = $region28
        $region27: #{tpu_custom_call.1} parent=23 // pred_region
          %s216 = sand.u32 %s32, 1
          %s217 = scalar_lea.sflag [#allocation3], %s216
          %s218 = sand.u32 %s32, 1
          %s219 = smul.addr %s218, 4
          %s220 = scalar_lea.vmem [#allocation2], %s219
          %222 = vsyncadd %s217, 0
          %s223 = smul.addr %s22, 4
          %s224 = scalar_lea.hbm %s0, %s223
          %s226 = sshll.u32 %s224, 4
          %s227 = int_to_ptr.hbm [resolvable:$true] %s226
          %s228 = sshll.u32 %s220, 4
          %s229 = int_to_ptr.vmem [resolvable:$true] %s228
          %231 = dma.hbm_to_vmem [thread:$0]  %s227, 64, %s229, %s217
        $region28: #{tpu_custom_call.1} parent=23 // pred_fallthru
          _
        // Predicated region
        $region29: #{tpu_custom_call.1} parent=23 // pred_check
          %p232 = pneg %p110
        $region30: #{tpu_custom_call.1} parent=23 // pred_check_branch
          %234 = sbr.rel (%p232) target = $region32
        $region31: #{tpu_custom_call.1} parent=23 // pred_region
          %p235 = scmp.lt.s32.totalorder %s22, 1
          %s236 = scalar_select %p235, %s22, 1
          %s237 = scalar_lea.vmem %s3, %s236
        $region32: #{tpu_custom_call.1} parent=23 // pred_fallthru
          _
      $region24: #{tpu_custom_call.1} parent=5 // pred_fallthru
        _
      %p238 = scmp.le.s32.totalorder 1, %s22
      %p239 = scmp.lt.s32.totalorder %s22, 3
      %p240 = pnand %p238, %p239
      %p241 = pneg %p240
      // Predicated region
      $region33: #{tpu_custom_call.1} parent=5 // pred_check
        _
      $region34: #{tpu_custom_call.1} parent=5 // pred_check_branch
        %243 = sbr.rel (%p240) target = $region36
      $region35: #{tpu_custom_call.1} parent=5 // pred_region
        %s244 = ssub.s32 %s22, 1
        %s245 = sand.u32 %s35, 1
        %s246 = scalar_lea.sflag [#allocation3], %s245
        %s247 = sand.u32 %s35, 1
        %s248 = smul.addr %s247, 4
        %s249 = scalar_lea.vmem [#allocation2], %s248
        // Predicated region
        $region37: #{tpu_custom_call.1} parent=35 // pred_check
          %p250 = pneg %p48
        $region38: #{tpu_custom_call.1} parent=35 // pred_check_branch
          %252 = sbr.rel (%p250) target = $region40
        $region39: #{tpu_custom_call.1} parent=35 // pred_region
          %254 = dma.done %s246, 64
        $region40: #{tpu_custom_call.1} parent=35 // pred_fallthru
          _
        // Predicated region
        $region41: #{tpu_custom_call.1} parent=35 // pred_check
          %p255 = pneg %p69
        $region42: #{tpu_custom_call.1} parent=35 // pred_check_branch
          %257 = sbr.rel (%p255) target = $region44
        $region43: #{tpu_custom_call.1} parent=35 // pred_region
          %259 = dma.done [#allocation6], 256
        $region44: #{tpu_custom_call.1} parent=35 // pred_fallthru
          _
        // Predicated region
        $region45: #{tpu_custom_call.1} parent=35 // pred_check
          %p260 = pneg %p90
        $region46: #{tpu_custom_call.1} parent=35 // pred_check_branch
          %262 = sbr.rel (%p260) target = $region48
        $region47: #{tpu_custom_call.1} parent=35 // pred_region
          %264 = dma.done [#allocation6], 16
        $region48: #{tpu_custom_call.1} parent=35 // pred_fallthru
          _
        %s265 = sand.u32 %s35, 1
        %s266 = scalar_lea.sflag [#allocation3], %s265
        %s267 = sand.u32 %s35, 1
        %s268 = smul.addr %s267, 4
        %s269 = scalar_lea.vmem [#allocation2], %s268
        %p270 = pneg %p48
        %p271 = pneg %p45
        %p272 = pneg %p69
        %p273 = pneg %p66
        %p274 = pneg %p90
        %p275 = pneg %p87
        %p276 = scmp.lt.s32.totalorder %s27, 1
        %s277 = scalar_select %p276, %s27, 1
        %s278 = scalar_lea.vmem %s3, %s277
        %p279 = pneg %p116
        %p280 = pneg %p113
        %p281 = pneg %p142
        %p282 = pneg %p139
        %s283 = sand.u32 %s129, 1
        %s284 = scalar_lea.sflag [#allocation4], %s283
        %s285 = sand.u32 %s129, 1
        %s286 = smul.addr %s285, 32
        %s287 = scalar_lea.vmem [#allocation8], %s286
        %p288 = pneg %p168
        %p289 = pneg %p165
        %s290 = sand.u32 %s155, 1
        %s291 = scalar_lea.sflag [#allocation10], %s290
        %s292 = sand.u32 %s155, 1
        %s293 = smul.addr %s292, 32
        %s294 = scalar_lea.vmem [#allocation9], %s293
        %p295 = scmp.lt.s32.totalorder %s27, 1
        %s296 = scalar_select %p295, %s27, 1
        %s297 = scalar_lea.vmem %s3, %s296
        %v299 = vld [vmem:[%s249] sm:$0xf]
        %v300 = vld [vmem:[%s297] sm:$0x1]
        %v302 = vperm.slane %v300, 0
        %v304 = vld [vmem:[#allocation5] sm:$0xf]
        %v305 = vld [vmem:[#allocation5 + $0x4] sm:$0xf]
        %v306 = vld [vmem:[#allocation5 + $0x8] sm:$0xf]
        %v307 = vld [vmem:[#allocation5 + $0xc] sm:$0xf]
        %v308 = vld [vmem:[#allocation7] sm:$0x1]
        %v310 = vperm.slane %v308, 0
        %v316 = vunpack.c.l.b16 %v304
        %v317 = vunpack.c.l.b16 %v305
        %v318 = vunpack.c.l.b16 %v306
        %v319 = vunpack.c.l.b16 %v307
        %v320 = vpack.c.b16 %v317, %v316
        %v321 = vpack.c.b16 %v319, %v318
        %vm324 = vcmask 261120
        %v326 = vsel %vm324, %v299, 0
        %328 = vmatpush.bf16.msra.mxu0 0
        %329 = vmatpush.bf16.msra.mxu0 0
        %330 = vmatpush.bf16.msra.mxu0 0
        %331 = vmatpush.bf16.msra.mxu0 0
        %332 = vmatpush.bf16.msra.mxu0 0
        %333 = vmatpush.bf16.msra.mxu0 0
        %334 = vmatpush.bf16.msra.mxu0 %v321
        %335 = vmatpush.bf16.msra.mxu0 %v320
        %336 = vmatmul.bf16.gmra.mxu0 %v326
        %v337 = vpop.f32.mrf.mxu0
        %v338 = vadd.f32 %v310, %v337
        %v339 = vpop.f32.mrf.mxu0
        %340 = vdwg.mxu0
        %v341 = vmul.f32 %v338, 0.35355338
        %343 = vrot.lane.b32.xlu0 %v338, 96
        %v344 = vpop.permute.xlu0 %343
        %vm345 = vcmask 64512
        %v347 = vsel %vm345, %v341, 0
        %v349 = vsel %vm345, %v344, 0
        %351 = vmatpush.xpose.msra.mxu0 0.0
        %352 = vmatpush.xpose.msra.mxu0 0.0
        %353 = vmatpush.xpose.msra.mxu0 0.0
        %354 = vmatpush.xpose.msra.mxu0 0.0
        %355 = vmatpush.xpose.msra.mxu0 0.0
        %356 = vmatpush.xpose.msra.mxu0 0.0
        %357 = vmatpush.xpose.msra.mxu0 0.0
        %358 = vmatpush.xpose.msra.mxu0 0.0
        %359 = vmatpush.xpose.msra.mxu0 0.0
        %360 = vmatpush.xpose.msra.mxu0 0.0
        %361 = vmatpush.xpose.msra.mxu0 0.0
        %362 = vmatpush.xpose.msra.mxu0 0.0
        %363 = vmatpush.xpose.msra.mxu0 0.0
        %364 = vmatpush.xpose.msra.mxu0 0.0
        %365 = vmatpush.xpose.msra.mxu0 0.0
        %366 = vmatpush.xpose.msra.mxu0 %v349
        %367 = vmatmul.f32.gmra.mxu0 %v347
        %v368 = vpop.f32.mrf.mxu0
        %v369 = vadd.f32 %v302, %v368
        %370 = vdwg.mxu0
        %v371 = vsel %vm345, %v369, -inf
        %372 = vmax.xlane.f32.xlu0 %v371
        %v373 = vpop.xlane.xlu0 %372
        %v374 = vsub.f32 %v369, %v373
        %v375 = vmul.f32 %v374, 1.442695
        %v376 = vpow.pop %v375
        %v377 = vsel %vm345, %v376, 0.0
        %378 = vadd.xlane.f32.xlu0 %v377
        %v379 = vpop.xlane.xlu0 %378
        %v380 = vrcp.pop %v379
        %v381 = vmul.f32 %v376, %v380
        %382 = vrot.lane.b32.xlu0 %v338, 64
        %v383 = vpop.permute.xlu0 %382
        %v386 = vsel %vm345, %v381, 0
        %388 = vmatpush.msra.mxu0 0.0
        %389 = vmatpush.msra.mxu0 0.0
        %390 = vmatpush.msra.mxu0 0.0
        %391 = vmatpush.msra.mxu0 0.0
        %392 = vmatpush.msra.mxu0 0.0
        %393 = vmatpush.msra.mxu0 0.0
        %394 = vmatpush.msra.mxu0 0.0
        %395 = vmatpush.msra.mxu0 0.0
        %396 = vmatpush.msra.mxu0 0.0
        %397 = vmatpush.msra.mxu0 0.0
        %398 = vmatpush.msra.mxu0 0.0
        %399 = vmatpush.msra.mxu0 0.0
        %400 = vmatpush.msra.mxu0 0.0
        %401 = vmatpush.msra.mxu0 0.0
        %402 = vmatpush.msra.mxu0 0.0
        %403 = vmatpush.msra.mxu0 %v383
        %404 = vmatmul.f32.gmra.mxu0 %v386
        %v405 = vpop.f32.mrf.mxu0
        %v406 = vadd.f32 0.0, %v405
        %407 = vdwg.mxu0
        %408 = vrot.lane.b32.xlu0 %v341, 120
        %v409 = vpop.permute.xlu0 %408
        %410 = vrot.lane.b32.xlu0 %v338, 88
        %v411 = vpop.permute.xlu0 %410
        %v412 = vsel %vm345, %v409, 0
        %v414 = vsel %vm345, %v411, 0
        %416 = vmatpush.xpose.msra.mxu0 0.0
        %417 = vmatpush.xpose.msra.mxu0 0.0
        %418 = vmatpush.xpose.msra.mxu0 0.0
        %419 = vmatpush.xpose.msra.mxu0 0.0
        %420 = vmatpush.xpose.msra.mxu0 0.0
        %421 = vmatpush.xpose.msra.mxu0 0.0
        %422 = vmatpush.xpose.msra.mxu0 0.0
        %423 = vmatpush.xpose.msra.mxu0 0.0
        %424 = vmatpush.xpose.msra.mxu0 0.0
        %425 = vmatpush.xpose.msra.mxu0 0.0
        %426 = vmatpush.xpose.msra.mxu0 0.0
        %427 = vmatpush.xpose.msra.mxu0 0.0
        %428 = vmatpush.xpose.msra.mxu0 0.0
        %429 = vmatpush.xpose.msra.mxu0 0.0
        %430 = vmatpush.xpose.msra.mxu0 0.0
        %431 = vmatpush.xpose.msra.mxu0 %v414
        %432 = vmatmul.f32.gmra.mxu0 %v412
        %v433 = vpop.f32.mrf.mxu0
        %v434 = vadd.f32 %v302, %v433
        %435 = vdwg.mxu0
        %v436 = vsel %vm345, %v434, -inf
        %437 = vmax.xlane.f32.xlu0 %v436
        %v438 = vpop.xlane.xlu0 %437
        %v439 = vsub.f32 %v434, %v438
        %v440 = vmul.f32 %v439, 1.442695
        %v441 = vpow.pop %v440
        %v442 = vsel %vm345, %v441, 0.0
        %443 = vadd.xlane.f32.xlu0 %v442
        %v444 = vpop.xlane.xlu0 %443
        %v445 = vrcp.pop %v444
        %v446 = vmul.f32 %v441, %v445
        %447 = vrot.lane.b32.xlu0 %v338, 56
        %v448 = vpop.permute.xlu0 %447
        %v451 = vsel %vm345, %v446, 0
        %453 = vmatpush.msra.mxu0 0.0
        %454 = vmatpush.msra.mxu0 0.0
        %455 = vmatpush.msra.mxu0 0.0
        %456 = vmatpush.msra.mxu0 0.0
        %457 = vmatpush.msra.mxu0 0.0
        %458 = vmatpush.msra.mxu0 0.0
        %459 = vmatpush.msra.mxu0 0.0
        %460 = vmatpush.msra.mxu0 0.0
        %461 = vmatpush.msra.mxu0 0.0
        %462 = vmatpush.msra.mxu0 0.0
        %463 = vmatpush.msra.mxu0 0.0
        %464 = vmatpush.msra.mxu0 0.0
        %465 = vmatpush.msra.mxu0 0.0
        %466 = vmatpush.msra.mxu0 0.0
        %467 = vmatpush.msra.mxu0 0.0
        %468 = vmatpush.msra.mxu0 %v448
        %469 = vmatmul.f32.gmra.mxu0 %v451
        %v470 = vpop.f32.mrf.mxu0
        %v471 = vadd.f32 0.0, %v470
        %472 = vdwg.mxu0
        %473 = vrot.lane.b32.xlu0 %v341, 112
        %v474 = vpop.permute.xlu0 %473
        %475 = vrot.lane.b32.xlu0 %v338, 80
        %v476 = vpop.permute.xlu0 %475
        %v477 = vsel %vm345, %v474, 0
        %v479 = vsel %vm345, %v476, 0
        %481 = vmatpush.xpose.msra.mxu0 0.0
        %482 = vmatpush.xpose.msra.mxu0 0.0
        %483 = vmatpush.xpose.msra.mxu0 0.0
        %484 = vmatpush.xpose.msra.mxu0 0.0
        %485 = vmatpush.xpose.msra.mxu0 0.0
        %486 = vmatpush.xpose.msra.mxu0 0.0
        %487 = vmatpush.xpose.msra.mxu0 0.0
        %488 = vmatpush.xpose.msra.mxu0 0.0
        %489 = vmatpush.xpose.msra.mxu0 0.0
        %490 = vmatpush.xpose.msra.mxu0 0.0
        %491 = vmatpush.xpose.msra.mxu0 0.0
        %492 = vmatpush.xpose.msra.mxu0 0.0
        %493 = vmatpush.xpose.msra.mxu0 0.0
        %494 = vmatpush.xpose.msra.mxu0 0.0
        %495 = vmatpush.xpose.msra.mxu0 0.0
        %496 = vmatpush.xpose.msra.mxu0 %v479
        %497 = vmatmul.f32.gmra.mxu0 %v477
        %v498 = vpop.f32.mrf.mxu0
        %v499 = vadd.f32 %v302, %v498
        %500 = vdwg.mxu0
        %v501 = vsel %vm345, %v499, -inf
        %502 = vmax.xlane.f32.xlu0 %v501
        %v503 = vpop.xlane.xlu0 %502
        %v504 = vsub.f32 %v499, %v503
        %v505 = vmul.f32 %v504, 1.442695
        %v506 = vpow.pop %v505
        %v507 = vsel %vm345, %v506, 0.0
        %508 = vadd.xlane.f32.xlu0 %v507
        %v509 = vpop.xlane.xlu0 %508
        %v510 = vrcp.pop %v509
        %v511 = vmul.f32 %v506, %v510
        %512 = vrot.lane.b32.xlu0 %v338, 48
        %v513 = vpop.permute.xlu0 %512
        %v516 = vsel %vm345, %v511, 0
        %518 = vmatpush.msra.mxu0 0.0
        %519 = vmatpush.msra.mxu0 0.0
        %520 = vmatpush.msra.mxu0 0.0
        %521 = vmatpush.msra.mxu0 0.0
        %522 = vmatpush.msra.mxu0 0.0
        %523 = vmatpush.msra.mxu0 0.0
        %524 = vmatpush.msra.mxu0 0.0
        %525 = vmatpush.msra.mxu0 0.0
        %526 = vmatpush.msra.mxu0 0.0
        %527 = vmatpush.msra.mxu0 0.0
        %528 = vmatpush.msra.mxu0 0.0
        %529 = vmatpush.msra.mxu0 0.0
        %530 = vmatpush.msra.mxu0 0.0
        %531 = vmatpush.msra.mxu0 0.0
        %532 = vmatpush.msra.mxu0 0.0
        %533 = vmatpush.msra.mxu0 %v513
        %534 = vmatmul.f32.gmra.mxu0 %v516
        %v535 = vpop.f32.mrf.mxu0
        %v536 = vadd.f32 0.0, %v535
        %537 = vdwg.mxu0
        %538 = vrot.lane.b32.xlu0 %v341, 104
        %v539 = vpop.permute.xlu0 %538
        %540 = vrot.lane.b32.xlu0 %v338, 72
        %v541 = vpop.permute.xlu0 %540
        %v542 = vsel %vm345, %v539, 0
        %v544 = vsel %vm345, %v541, 0
        %546 = vmatpush.xpose.msra.mxu0 0.0
        %547 = vmatpush.xpose.msra.mxu0 0.0
        %548 = vmatpush.xpose.msra.mxu0 0.0
        %549 = vmatpush.xpose.msra.mxu0 0.0
        %550 = vmatpush.xpose.msra.mxu0 0.0
        %551 = vmatpush.xpose.msra.mxu0 0.0
        %552 = vmatpush.xpose.msra.mxu0 0.0
        %553 = vmatpush.xpose.msra.mxu0 0.0
        %554 = vmatpush.xpose.msra.mxu0 0.0
        %555 = vmatpush.xpose.msra.mxu0 0.0
        %556 = vmatpush.xpose.msra.mxu0 0.0
        %557 = vmatpush.xpose.msra.mxu0 0.0
        %558 = vmatpush.xpose.msra.mxu0 0.0
        %559 = vmatpush.xpose.msra.mxu0 0.0
        %560 = vmatpush.xpose.msra.mxu0 0.0
        %561 = vmatpush.xpose.msra.mxu0 %v544
        %562 = vmatmul.f32.gmra.mxu0 %v542
        %v563 = vpop.f32.mrf.mxu0
        %v564 = vadd.f32 %v302, %v563
        %565 = vdwg.mxu0
        %v566 = vsel %vm345, %v564, -inf
        %567 = vmax.xlane.f32.xlu0 %v566
        %v568 = vpop.xlane.xlu0 %567
        %v569 = vsub.f32 %v564, %v568
        %v570 = vmul.f32 %v569, 1.442695
        %v571 = vpow.pop %v570
        %v572 = vsel %vm345, %v571, 0.0
        %573 = vadd.xlane.f32.xlu0 %v572
        %v574 = vpop.xlane.xlu0 %573
        %v575 = vrcp.pop %v574
        %v576 = vmul.f32 %v571, %v575
        %577 = vrot.lane.b32.xlu0 %v338, 40
        %v578 = vpop.permute.xlu0 %577
        %v581 = vsel %vm345, %v576, 0
        %583 = vmatpush.msra.mxu0 0.0
        %584 = vmatpush.msra.mxu0 0.0
        %585 = vmatpush.msra.mxu0 0.0
        %586 = vmatpush.msra.mxu0 0.0
        %587 = vmatpush.msra.mxu0 0.0
        %588 = vmatpush.msra.mxu0 0.0
        %589 = vmatpush.msra.mxu0 0.0
        %590 = vmatpush.msra.mxu0 0.0
        %591 = vmatpush.msra.mxu0 0.0
        %592 = vmatpush.msra.mxu0 0.0
        %593 = vmatpush.msra.mxu0 0.0
        %594 = vmatpush.msra.mxu0 0.0
        %595 = vmatpush.msra.mxu0 0.0
        %596 = vmatpush.msra.mxu0 0.0
        %597 = vmatpush.msra.mxu0 0.0
        %598 = vmatpush.msra.mxu0 %v578
        %599 = vmatmul.f32.gmra.mxu0 %v581
        %v600 = vpop.f32.mrf.mxu0
        %v601 = vadd.f32 0.0, %v600
        %602 = vdwg.mxu0
        %603 = vst.msk [vmem:[%s294] sm:$0xff] %vm345, %v381
        %604 = vst.msk [vmem:[%s294 + $0x8] sm:$0xff] %vm345, %v446
        %605 = vst.msk [vmem:[%s294 + $0x10] sm:$0xff] %vm345, %v511
        %606 = vst.msk [vmem:[%s294 + $0x18] sm:$0xff] %vm345, %v576
        %607 = vst.msk [vmem:[%s287] sm:$0xff] %vm345, %v406
        %608 = vst.msk [vmem:[%s287 + $0x8] sm:$0xff] %vm345, %v471
        %609 = vst.msk [vmem:[%s287 + $0x10] sm:$0xff] %vm345, %v536
        %610 = vst.msk [vmem:[%s287 + $0x18] sm:$0xff] %vm345, %v601
        %s611 = sand.u32 %s129, 1
        %s612 = scalar_lea.sflag [#allocation4], %s611
        %s613 = sand.u32 %s129, 1
        %s614 = smul.addr %s613, 32
        %s615 = scalar_lea.vmem [#allocation8], %s614
        %s616 = sand.u32 %s155, 1
        %s617 = scalar_lea.sflag [#allocation10], %s616
        %s618 = sand.u32 %s155, 1
        %s619 = smul.addr %s618, 32
        %s620 = scalar_lea.vmem [#allocation9], %s619
        // Predicated region
        $region49: #{tpu_custom_call.1} parent=35 // pred_check
          %p621 = pneg %p139
        $region50: #{tpu_custom_call.1} parent=35 // pred_check_branch
          %623 = sbr.rel (%p621) target = $region52
        $region51: #{tpu_custom_call.1} parent=35 // pred_region
          %625 = vsyncadd %s612, 0
          %s626 = smul.addr %s27, 4
          %s627 = smul.addr %s626, 8
          %s628 = scalar_lea.hbm %s4, %s627
          %s629 = sshll.u32 %s615, 4
          %s630 = int_to_ptr.vmem [resolvable:$true] %s629
          %s631 = sshll.u32 %s628, 4
          %s632 = int_to_ptr.hbm [resolvable:$true] %s631
          %637 = dma.vmem_to_hbm [thread:$0]  %s630, 512, %s632, %s612, 128, 128, 8
        $region52: #{tpu_custom_call.1} parent=35 // pred_fallthru
          _
        // Predicated region
        $region53: #{tpu_custom_call.1} parent=35 // pred_check
          %p638 = pneg %p165
        $region54: #{tpu_custom_call.1} parent=35 // pred_check_branch
          %640 = sbr.rel (%p638) target = $region56
        $region55: #{tpu_custom_call.1} parent=35 // pred_region
          %642 = vsyncadd %s617, 0
          %s643 = smul.addr %s27, 4
          %s644 = smul.addr %s643, 8
          %s645 = scalar_lea.hbm %s5, %s644
          %s646 = sshll.u32 %s620, 4
          %s647 = int_to_ptr.vmem [resolvable:$true] %s646
          %s648 = sshll.u32 %s645, 4
          %s649 = int_to_ptr.hbm [resolvable:$true] %s648
          %654 = dma.vmem_to_hbm [thread:$0]  %s647, 512, %s649, %s617, 128, 128, 8
        $region56: #{tpu_custom_call.1} parent=35 // pred_fallthru
          _
      $region36: #{tpu_custom_call.1} parent=5 // pred_fallthru
        _
      %p655 = scmp.le.s32.totalorder 2, %s22
      // Predicated region
      $region57: #{tpu_custom_call.1} parent=5 // pred_check
        %p656 = pneg %p655
      $region58: #{tpu_custom_call.1} parent=5 // pred_check_branch
        %658 = sbr.rel (%p656) target = $region60
      $region59: #{tpu_custom_call.1} parent=5 // pred_region
        %s659 = ssub.s32 %s22, 2
        // Predicated region
        $region61: #{tpu_custom_call.1} parent=59 // pred_check
          %p660 = pneg %p145
        $region62: #{tpu_custom_call.1} parent=59 // pred_check_branch
          %662 = sbr.rel (%p660) target = $region64
        $region63: #{tpu_custom_call.1} parent=59 // pred_region
          %s663 = sand.u32 %s130, 1
          %s664 = scalar_lea.sflag [#allocation4], %s663
          %s665 = sand.u32 %s130, 1
          %s666 = smul.addr %s665, 32
          %s667 = scalar_lea.vmem [#allocation8], %s666
          %669 = dma.done %s664, 512
        $region64: #{tpu_custom_call.1} parent=59 // pred_fallthru
          _
        // Predicated region
        $region65: #{tpu_custom_call.1} parent=59 // pred_check
          %p670 = pneg %p171
        $region66: #{tpu_custom_call.1} parent=59 // pred_check_branch
          %672 = sbr.rel (%p670) target = $region68
        $region67: #{tpu_custom_call.1} parent=59 // pred_region
          %s673 = sand.u32 %s156, 1
          %s674 = scalar_lea.sflag [#allocation10], %s673
          %s675 = sand.u32 %s156, 1
          %s676 = smul.addr %s675, 32
          %s677 = scalar_lea.vmem [#allocation9], %s676
          %679 = dma.done %s674, 512
        $region68: #{tpu_custom_call.1} parent=59 // pred_fallthru
          _
      $region60: #{tpu_custom_call.1} parent=5 // pred_fallthru
        _
    $region6: #{tpu_custom_call.1} parent=1 // loop_footer
      %s26 = sadd.s32 1, %s22
    $region7: #{tpu_custom_call.1} parent=1 // loop_footer_branch
      %21 = sbr.rel target = $region3
    $region8: #{tpu_custom_call.1} parent=1 // loop_exit
      _
    %680 = vsyncpa [#allocation3], 1
    %s681 = scalar_lea.sflag [#allocation3], 1
    %682 = vsyncpa %s681, 1
    %683 = vsyncpa [#allocation6], 1
    %684 = vsyncpa [#allocation4], 1
    %s685 = scalar_lea.sflag [#allocation4], 1
    %686 = vsyncpa %s685, 1
    %687 = vsyncpa [#allocation10], 1
    %s688 = scalar_lea.sflag [#allocation10], 1
    %689 = vsyncpa %s688, 1

</llo_original>
